<compile_context>
chip_gen: v7x
topology: tpu7x:2x2x1
jax: 0.10.0
libtpu: 0.0.40
codegen_flags: <defaults>
</compile_context>

<pallas_src>
import functools

import jax
import jax.numpy as jnp
from jax.experimental import pallas as pl
from jax.experimental.pallas import tpu as pltpu

# Layer widths from the PyTorch module.
H0, H1, H2 = 128, 256, 256
# Lane-padded widths for the narrow head dims.
HP = 128             # obs_space[0]*2 (=12) padded to lane width
AP = 128              # num_actions (=5) padded to lane width
PACK_COLS = 256       # packed weight buffer column width (max layer width)
BIAS_ROWS = 16        # bf16 sublane tile -> keeps every row offset 16-aligned


def dqn_kernel(x_ref, wb_ref, q_ref, *, d_in, rows):
    """Fused dueling-DQN MLP over one packed bf16 weight buffer.

    The dueling combine is pre-folded into wq/bq, so the body is 5 matmuls +
    ReLUs. All weight views are static, (16,128)-aligned slices of wb_ref.
    """
    r0, r1, r2, r3, r4, rb = rows
    f32 = jnp.float32
    bf16 = jnp.bfloat16

    w0 = wb_ref[r0:r0 + d_in, 0:H0]
    w1 = wb_ref[r1:r1 + H0, 0:H1]
    w2 = wb_ref[r2:r2 + H1, 0:H2]
    w3 = wb_ref[r3:r3 + H2, 0:HP]
    wq = wb_ref[r4:r4 + HP, 0:AP]
    biases = wb_ref[rb:rb + BIAS_ROWS, :].astype(f32)          # (16, 256)
    b0 = biases[0:1, 0:H0]
    b1 = biases[1:2, 0:H1]
    b2 = biases[2:3, 0:H2]
    b3 = biases[3:4, 0:HP]
    bq = biases[4:5, 0:AP]

    x = x_ref[...]                                              # bf16 (TB, d_in)
    h = jnp.dot(x, w0, preferred_element_type=f32) + b0         # fc0.0
    h = jnp.maximum(h, 0.0).astype(bf16)
    h = jnp.dot(h, w1, preferred_element_type=f32) + b1         # fc0.2
    h = jnp.maximum(h, 0.0).astype(bf16)
    h = jnp.dot(h, w2, preferred_element_type=f32) + b2         # fc1
    h = jnp.maximum(h, 0.0).astype(bf16)
    h3 = jnp.dot(h, w3, preferred_element_type=f32) + b3        # fc2 (lane-padded)
    h3 = jnp.maximum(h3, 0.0).astype(bf16)
    # Folded dueling head: value + adv - mean(adv)  ==  h3 @ wq + bq.
    q_ref[...] = jnp.dot(h3, wq, preferred_element_type=f32) + bq


def make_params(key, n, obs0, num_actions):
    """Deterministic parameter init (PyTorch Linear-style). Weights (in, out), f32."""
    d_in = n * 4 + 8
    dims = [(d_in, H0), (H0, H1), (H1, H2), (H2, obs0 * 2),
            (obs0 * 2, 1), (obs0 * 2, num_actions)]
    params = []
    for fin, fout in dims:
        kw, kb, key = jax.random.split(key, 3)
        scale = (1.0 / fin) ** 0.5
        w = jax.random.uniform(kw, (fin, fout), jnp.float32, -scale, scale)
        b = jax.random.uniform(kb, (1, fout), jnp.float32, -scale, scale)
        params += [w, b]
    return params


def pack_params(params, n, obs0, num_actions):
    """Fold the dueling head into the final weights (exact, f32) and pack all
    layers into one tile-aligned bf16 buffer (single HBM->VMEM DMA)."""
    w0, b0, w1, b1, w2, b2, w3, b3, wv, bv, wa, ba = params
    d_in = n * 4 + 8
    head = obs0 * 2

    # q = (h3@wv + bv) + (h3@wa + ba) - mean_cols(h3@wa + ba)
    #   = h3 @ (wv + wa - mean_cols(wa)) + (bv + ba - mean(ba))
    wq = wv + wa - jnp.mean(wa, axis=1, keepdims=True)
    bq = bv + ba - jnp.mean(ba, axis=1, keepdims=True)

    # Zero-pad the narrow head dims to lane width (padding is inert).
    w3p = jnp.zeros((H2, HP), jnp.float32).at[:, :head].set(w3)
    b3p = jnp.zeros((1, HP), jnp.float32).at[:, :head].set(b3)
    wqp = jnp.zeros((HP, AP), jnp.float32).at[:head, :num_actions].set(wq)
    bqp = jnp.zeros((1, AP), jnp.float32).at[:, :num_actions].set(bq)

    def padc(w):
        return jnp.zeros((w.shape[0], PACK_COLS), jnp.float32).at[:, :w.shape[1]].set(w)

    blocks = [padc(w0), padc(w1), padc(w2), padc(w3p), padc(wqp)]
    bias_block = jnp.zeros((BIAS_ROWS, PACK_COLS), jnp.float32)
    for i, b in enumerate([b0, b1, b2, b3p, bqp]):
        bias_block = bias_block.at[i, :b.shape[1]].set(b[0])
    packed = jnp.concatenate(blocks + [bias_block], axis=0).astype(jnp.bfloat16)

    r0 = 0
    r1 = r0 + d_in          # 32
    r2 = r1 + H0            # 160
    r3 = r2 + H1            # 416
    r4 = r3 + H2            # 672
    rb = r4 + HP            # 800  -> total rows 816 (multiple of 16)
    return packed, (r0, r1, r2, r3, r4, rb)


def _round_up(x, m):
    return (x + m - 1) // m * m


@functools.partial(jax.jit,
                   static_argnames=("rows", "d_in", "num_actions", "max_tb"))
def dqn_forward(obs, feat, packed, *, rows, d_in, num_actions, max_tb=256):
    B = obs.shape[0]
    # Glue: flatten + concat (nn.Flatten + th.cat); cast to bf16 at MXU input.
    x = jnp.concatenate([obs.reshape(B, -1), feat.reshape(B, -1)],
                        axis=-1).astype(jnp.bfloat16)

    # Batch tiling: pad rows to a sublane-friendly tile; one grid step per tile.
    tb = max_tb if B >= max_tb else _round_up(B, 8)
    bp = _round_up(B, tb)
    xp = jnp.zeros((bp, d_in), jnp.bfloat16).at[:B].set(x)

    flops = 2 * bp * (d_in * H0 + H0 * H1 + H1 * H2 + H2 * HP + HP * AP)
    bytes_accessed = xp.size * 2 + packed.size * 2 + bp * AP * 4

    kernel = functools.partial(dqn_kernel, d_in=d_in, rows=rows)
    q = pl.pallas_call(
        kernel,
        out_shape=jax.ShapeDtypeStruct((bp, AP), jnp.float32),
        grid_spec=pltpu.PrefetchScalarGridSpec(
            num_scalar_prefetch=0,
            grid=(bp // tb,),
            in_specs=[
                pl.BlockSpec((tb, d_in), lambda i: (i, 0)),      # stream activations
                pl.BlockSpec(packed.shape, lambda i: (0, 0)),    # weights resident
            ],
            out_specs=pl.BlockSpec((tb, AP), lambda i: (i, 0)),  # lane-dense output
        ),
        compiler_params=pltpu.CompilerParams(
            dimension_semantics=("parallel",)),
        cost_estimate=pl.CostEstimate(flops=flops, transcendentals=0,
                                      bytes_accessed=bytes_accessed),
    )(xp, packed)

    # Slice off batch + lane padding. (The PyTorch `if q.ndim == 1` branch is
    # dead code for batched inputs, so it is intentionally dropped.)
    return q[:B, :num_actions]


def _reference(obs, feat, params):
    """Pure-JAX f32 reference of the ORIGINAL (unfused) module math."""
    B = obs.shape[0]
    x = jnp.concatenate([obs.reshape(B, -1), feat.reshape(B, -1)], axis=-1)
    w0, b0, w1, b1, w2, b2, w3, b3, wv, bv, wa, ba = params
    h = jnp.maximum(x @ w0 + b0, 0.0)
    h = jnp.maximum(h @ w1 + b1, 0.0)
    h = jnp.maximum(h @ w2 + b2, 0.0)
    h3 = jnp.maximum(h @ w3 + b3, 0.0)
    adv = h3 @ wa + ba
    value = h3 @ wv + bv
    return value + adv - jnp.mean(adv, axis=1, keepdims=True)


if __name__ == "__main__":
    # Shapes consistent with the module:
    #   args.N = 6, obs_space = (6, 4) -> obs flattens to N*4 = 24
    #   feat_space = (8,)              -> feat flattens to 8
    #   fc0 input = N*4 + 8 = 32, head = obs_space[0]*2 = 12, num_actions = 5
    N = 6
    OBS0 = 6
    NUM_ACTIONS = 5
    D_IN = N * 4 + 8

    key = jax.random.PRNGKey(0)
    k_obs, k_feat, k_params, k_obs2, k_feat2 = jax.random.split(key, 5)
    params = make_params(k_params, N, OBS0, NUM_ACTIONS)
    packed, rows = pack_params(params, N, OBS0, NUM_ACTIONS)

    # --- small batch (single grid tile) ---
    B = 2
    obs = jax.random.normal(k_obs, (B, OBS0, 4), jnp.float32)
    feat = jax.random.normal(k_feat, (B, 8), jnp.float32)
    q_values = dqn_forward(obs, feat, packed, rows=rows, d_in=D_IN,
                           num_actions=NUM_ACTIONS)
    jax.block_until_ready(q_values)
    q_ref = _reference(obs, feat, params)
    assert q_values.shape == (B, NUM_ACTIONS)
    # bf16 weights/activations on the MXU -> loosened tolerance vs f32 ref.
    assert jnp.allclose(q_values, q_ref, atol=5e-2, rtol=5e-2), \
        float(jnp.max(jnp.abs(q_values - q_ref)))

    # --- larger batch (exercises multi-tile grid + batch padding) ---
    B2 = 300
    obs2 = jax.random.normal(k_obs2, (B2, OBS0, 4), jnp.float32)
    feat2 = jax.random.normal(k_feat2, (B2, 8), jnp.float32)
    q2 = dqn_forward(obs2, feat2, packed, rows=rows, d_in=D_IN,
                     num_actions=NUM_ACTIONS)
    jax.block_until_ready(q2)
    q2_ref = _reference(obs2, feat2, params)
    assert q2.shape == (B2, NUM_ACTIONS)
    assert jnp.allclose(q2, q2_ref, atol=5e-2, rtol=5e-2), \
        float(jnp.max(jnp.abs(q2 - q2_ref)))

    print("KERNEL_OK")
</pallas_src>

<mosaic_0001>
module attributes {stable_mosaic.version = 11 : i64} {
  func.func @dqn_kernel(%arg0: i32, %arg1: memref<8x32xbf16, #tpu.memory_space<vmem>>, %arg2: memref<816x256xbf16, #tpu.memory_space<vmem>>, %arg3: memref<8x128xf32, #tpu.memory_space<vmem>>) attributes {dimension_semantics = [#tpu.dimension_semantics<parallel>], iteration_bounds = array<i64: 1>, scalar_prefetch = 0 : i64, scratch_operands = 0 : i64, tpu.core_type = #tpu.core_type<tc>, window_params = [{transform_indices = @transform_0, window_bounds = array<i64: 8, 32>}, {pipeline_mode = #tpu.pipeline_mode<synchronous>, transform_indices = @transform_1, window_bounds = array<i64: 816, 256>}, {transform_indices = @transform_2, window_bounds = array<i64: 8, 128>}]} {
    %c0 = arith.constant 0 : index
    %c0_0 = arith.constant 0 : index
    %0 = vector.load %arg2[%c0, %c0_0] : memref<816x256xbf16, #tpu.memory_space<vmem>>, vector<32x128xbf16>
    %c32 = arith.constant 32 : index
    %c0_1 = arith.constant 0 : index
    %1 = vector.load %arg2[%c32, %c0_1] : memref<816x256xbf16, #tpu.memory_space<vmem>>, vector<128x256xbf16>
    %c160 = arith.constant 160 : index
    %c0_2 = arith.constant 0 : index
    %2 = vector.load %arg2[%c160, %c0_2] : memref<816x256xbf16, #tpu.memory_space<vmem>>, vector<256x256xbf16>
    %c416 = arith.constant 416 : index
    %c0_3 = arith.constant 0 : index
    %3 = vector.load %arg2[%c416, %c0_3] : memref<816x256xbf16, #tpu.memory_space<vmem>>, vector<256x128xbf16>
    %c672 = arith.constant 672 : index
    %c0_4 = arith.constant 0 : index
    %4 = vector.load %arg2[%c672, %c0_4] : memref<816x256xbf16, #tpu.memory_space<vmem>>, vector<128x128xbf16>
    %c800 = arith.constant 800 : index
    %c0_5 = arith.constant 0 : index
    %5 = vector.load %arg2[%c800, %c0_5] : memref<816x256xbf16, #tpu.memory_space<vmem>>, vector<16x256xbf16>
    %6 = arith.extf %5 : vector<16x256xbf16> to vector<16x256xf32>
    %7 = vector.extract_strided_slice %6 {offsets = [0, 0], sizes = [1, 128], strides = [1, 1]} : vector<16x256xf32> to vector<1x128xf32>
    %8 = vector.extract_strided_slice %6 {offsets = [1, 0], sizes = [1, 256], strides = [1, 1]} : vector<16x256xf32> to vector<1x256xf32>
    %9 = vector.extract_strided_slice %6 {offsets = [2, 0], sizes = [1, 256], strides = [1, 1]} : vector<16x256xf32> to vector<1x256xf32>
    %10 = vector.extract_strided_slice %6 {offsets = [3, 0], sizes = [1, 128], strides = [1, 1]} : vector<16x256xf32> to vector<1x128xf32>
    %11 = vector.extract_strided_slice %6 {offsets = [4, 0], sizes = [1, 128], strides = [1, 1]} : vector<16x256xf32> to vector<1x128xf32>
    %c0_6 = arith.constant 0 : index
    %c0_7 = arith.constant 0 : index
    %12 = vector.load %arg1[%c0_6, %c0_7] : memref<8x32xbf16, #tpu.memory_space<vmem>>, vector<8x32xbf16>
    %cst = arith.constant dense<0.000000e+00> : vector<8x128xf32>
    %13 = tpu.matmul %12, %0, %cst {dimension_numbers = #tpu.dot_dimension_numbers<[1], [0], [0], [1], [0, 0, 1, 1], [], []>} : vector<8x32xbf16>, vector<32x128xbf16>, vector<8x128xf32> -> vector<8x128xf32>
    %14 = vector.broadcast %7 : vector<1x128xf32> to vector<8x128xf32>
    %15 = arith.addf %13, %14 : vector<8x128xf32>
    %cst_8 = arith.constant 0.000000e+00 : f32
    %16 = vector.broadcast %cst_8 : f32 to vector<8x128xf32>
    %17 = arith.maximumf %15, %16 : vector<8x128xf32>
    %18 = arith.truncf %17 : vector<8x128xf32> to vector<8x128xbf16>
    %cst_9 = arith.constant dense<0.000000e+00> : vector<8x256xf32>
    %19 = tpu.matmul %18, %1, %cst_9 {dimension_numbers = #tpu.dot_dimension_numbers<[1], [0], [0], [1], [0, 0, 1, 1], [], []>} : vector<8x128xbf16>, vector<128x256xbf16>, vector<8x256xf32> -> vector<8x256xf32>
    %20 = vector.broadcast %8 : vector<1x256xf32> to vector<8x256xf32>
    %21 = arith.addf %19, %20 : vector<8x256xf32>
    %cst_10 = arith.constant 0.000000e+00 : f32
    %22 = vector.broadcast %cst_10 : f32 to vector<8x256xf32>
    %23 = arith.maximumf %21, %22 : vector<8x256xf32>
    %24 = arith.truncf %23 : vector<8x256xf32> to vector<8x256xbf16>
    %cst_11 = arith.constant dense<0.000000e+00> : vector<8x256xf32>
    %25 = tpu.matmul %24, %2, %cst_11 {dimension_numbers = #tpu.dot_dimension_numbers<[1], [0], [0], [1], [0, 0, 1, 1], [], []>} : vector<8x256xbf16>, vector<256x256xbf16>, vector<8x256xf32> -> vector<8x256xf32>
    %26 = vector.broadcast %9 : vector<1x256xf32> to vector<8x256xf32>
    %27 = arith.addf %25, %26 : vector<8x256xf32>
    %cst_12 = arith.constant 0.000000e+00 : f32
    %28 = vector.broadcast %cst_12 : f32 to vector<8x256xf32>
    %29 = arith.maximumf %27, %28 : vector<8x256xf32>
    %30 = arith.truncf %29 : vector<8x256xf32> to vector<8x256xbf16>
    %cst_13 = arith.constant dense<0.000000e+00> : vector<8x128xf32>
    %31 = tpu.matmul %30, %3, %cst_13 {dimension_numbers = #tpu.dot_dimension_numbers<[1], [0], [0], [1], [0, 0, 1, 1], [], []>} : vector<8x256xbf16>, vector<256x128xbf16>, vector<8x128xf32> -> vector<8x128xf32>
    %32 = vector.broadcast %10 : vector<1x128xf32> to vector<8x128xf32>
    %33 = arith.addf %31, %32 : vector<8x128xf32>
    %cst_14 = arith.constant 0.000000e+00 : f32
    %34 = vector.broadcast %cst_14 : f32 to vector<8x128xf32>
    %35 = arith.maximumf %33, %34 : vector<8x128xf32>
    %36 = arith.truncf %35 : vector<8x128xf32> to vector<8x128xbf16>
    %cst_15 = arith.constant dense<0.000000e+00> : vector<8x128xf32>
    %37 = tpu.matmul %36, %4, %cst_15 {dimension_numbers = #tpu.dot_dimension_numbers<[1], [0], [0], [1], [0, 0, 1, 1], [], []>} : vector<8x128xbf16>, vector<128x128xbf16>, vector<8x128xf32> -> vector<8x128xf32>
    %38 = vector.broadcast %11 : vector<1x128xf32> to vector<8x128xf32>
    %39 = arith.addf %37, %38 : vector<8x128xf32>
    %c0_16 = arith.constant 0 : index
    %c0_17 = arith.constant 0 : index
    %40 = vector.load %arg3[%c0_16, %c0_17] : memref<8x128xf32, #tpu.memory_space<vmem>>, vector<8x128xf32>
    tpu.vector_store %arg3[%c0_16, %c0_17], %39 {strides = array<i32>} : memref<8x128xf32, #tpu.memory_space<vmem>>, vector<8x128xf32>,
    return
  }
  func.func @transform_0(%arg0: i32) -> (i32, i32) {
    %c0_i32 = arith.constant 0 : i32
    %c0_i32_0 = arith.constant 0 : i32
    return %arg0, %c0_i32 : i32, i32
  }
  func.func @transform_1(%arg0: i32) -> (i32, i32) {
    %c0_i32 = arith.constant 0 : i32
    %c0_i32_0 = arith.constant 0 : i32
    %c0_i32_1 = arith.constant 0 : i32
    return %c0_i32, %c0_i32_0 : i32, i32
  }
  func.func @transform_2(%arg0: i32) -> (i32, i32) {
    %c0_i32 = arith.constant 0 : i32
    %c0_i32_0 = arith.constant 0 : i32
    return %arg0, %c0_i32 : i32, i32
  }
}

</mosaic_0001>

<llo_original>
// kernel: dqn_forward.1
$region0: #{dqn_forward.1}
  #allocation0 [shape = 'u32[]', space=smem, size = 0x4, offset = 0x4, fixed_abs, tag = 'smem constant byte address 0x4 - core index']
  #allocation1 [shape = 'u32[144,128]{1,0:T(1,128)}', space=vmem, size = 0x12000, scoped, tag = 'internal scratch']
  %s0 = inlined_call_operand.vmem [shape: bf16[8,32], index: 0, kind: input, shape index: {}]
  %s1 = inlined_call_operand.hbm [shape: bf16[816,256], index: 1, kind: input, shape index: {}]
  %s2 = inlined_call_operand.vmem [shape: f32[8,128], index: 2, kind: output, shape index: {}]
  %s3 = sld [smem:[#allocation0]]
  $region22: #{dqn_forward.1} parent=0
    _
  %s5 = ssub.s32 1, %s3
  %s6 = scalar_select 0, %s5, %s3
  $region1: #{dqn_forward.1} parent=0
    #allocation2 [shape = 'u8[417792]{0}', space=vmem, size = 0x66000, scoped, tag = 'input window, operand 1, single buffered']
    #allocation3 [shape = 's32[1]{0}', space=sflag, size = 0x4, scoped, tag = 'scoped memory for dqn_forward.1']
    %7 = vsyncpa [#allocation3], 0
    // Predicated region
    $region2: #{dqn_forward.1} parent=1 // pred_check
      _
    $region3: #{dqn_forward.1} parent=1 // pred_check_branch
      %9 = sbr.rel (0) target = $region5
    $region4: #{dqn_forward.1} parent=1 // pred_region
      _
    $region5: #{dqn_forward.1} parent=1 // pred_fallthru
      _
    // Predicated region
    $region6: #{dqn_forward.1} parent=1 // pred_check
      _
    $region7: #{dqn_forward.1} parent=1 // pred_check_branch
      %11 = sbr.rel (0) target = $region9
    $region8: #{dqn_forward.1} parent=1 // pred_region
      %s13 = ssub.s32 13056, 13056
      %14 = vsyncadd [#allocation3], %s13
      %s15 = sshll.u32 [#allocation2], 4
      %s16 = int_to_ptr.vmem [resolvable:$true] %s15
      %21 = dma.hbm_to_vmem [thread:$0]  %s1, 13056, %s16, [#allocation3], 128, 128, 8
    $region9: #{dqn_forward.1} parent=1 // pred_fallthru
      _
    // Predicated region
    $region10: #{dqn_forward.1} parent=1 // pred_check
      _
    $region11: #{dqn_forward.1} parent=1 // pred_check_branch
      %23 = sbr.rel (0) target = $region13
    $region12: #{dqn_forward.1} parent=1 // pred_region
      %24 = dma.done [#allocation3], 13056
    $region13: #{dqn_forward.1} parent=1 // pred_fallthru
      _
    %v26 = vld [vmem:[#allocation2] sm:$0xf]
    %v27 = vld [vmem:[#allocation2 + $0x8] sm:$0xf]
    %v28 = vld [vmem:[#allocation2 + $0x10] sm:$0xf]
    %v29 = vld [vmem:[#allocation2 + $0x18] sm:$0xf]
    %v30 = vld [vmem:[#allocation2 + $0x20] sm:$0xff]
    %v31 = vld [vmem:[#allocation2 + $0x28] sm:$0xff]
    %v32 = vld [vmem:[#allocation2 + $0x30] sm:$0xff]
    %v33 = vld [vmem:[#allocation2 + $0x38] sm:$0xff]
    %v34 = vld [vmem:[#allocation2 + $0x40] sm:$0xff]
    %v35 = vld [vmem:[#allocation2 + $0x48] sm:$0xff]
    %v36 = vld [vmem:[#allocation2 + $0x50] sm:$0xff]
    %v37 = vld [vmem:[#allocation2 + $0x58] sm:$0xff]
    %v38 = vld [vmem:[#allocation2 + $0x60] sm:$0xff]
    %v39 = vld [vmem:[#allocation2 + $0x68] sm:$0xff]
    %v40 = vld [vmem:[#allocation2 + $0x70] sm:$0xff]
    %v41 = vld [vmem:[#allocation2 + $0x78] sm:$0xff]
    %v42 = vld [vmem:[#allocation2 + $0x80] sm:$0xff]
    %v43 = vld [vmem:[#allocation2 + $0x88] sm:$0xff]
    %v44 = vld [vmem:[#allocation2 + $0x90] sm:$0xff]
    %v45 = vld [vmem:[#allocation2 + $0x98] sm:$0xff]
    %v46 = vld [vmem:[#allocation2 + $0xa0] sm:$0xff]
    %v47 = vld [vmem:[#allocation2 + $0xa8] sm:$0xff]
    %v48 = vld [vmem:[#allocation2 + $0xb0] sm:$0xff]
    %v49 = vld [vmem:[#allocation2 + $0xb8] sm:$0xff]
    %v50 = vld [vmem:[#allocation2 + $0xc0] sm:$0xff]
    %v51 = vld [vmem:[#allocation2 + $0xc8] sm:$0xff]
    %v52 = vld [vmem:[#allocation2 + $0xd0] sm:$0xff]
    %v53 = vld [vmem:[#allocation2 + $0xd8] sm:$0xff]
    %v54 = vld [vmem:[#allocation2 + $0xe0] sm:$0xff]
    %v55 = vld [vmem:[#allocation2 + $0xe8] sm:$0xff]
    %v56 = vld [vmem:[#allocation2 + $0xf0] sm:$0xff]
    %v57 = vld [vmem:[#allocation2 + $0xf8] sm:$0xff]
    %v58 = vld [vmem:[#allocation2 + $0x100] sm:$0xff]
    %v59 = vld [vmem:[#allocation2 + $0x108] sm:$0xff]
    %v60 = vld [vmem:[#allocation2 + $0x110] sm:$0xff]
    %v61 = vld [vmem:[#allocation2 + $0x118] sm:$0xff]
    %v62 = vld [vmem:[#allocation2 + $0x120] sm:$0xff]
    %v63 = vld [vmem:[#allocation2 + $0x128] sm:$0xff]
    %v64 = vld [vmem:[#allocation2 + $0x130] sm:$0xff]
    %v65 = vld [vmem:[#allocation2 + $0x138] sm:$0xff]
    %v66 = vld [vmem:[#allocation2 + $0x140] sm:$0xff]
    %v67 = vld [vmem:[#allocation2 + $0x148] sm:$0xff]
    %v68 = vld [vmem:[#allocation2 + $0x150] sm:$0xff]
    %v69 = vld [vmem:[#allocation2 + $0x158] sm:$0xff]
    %v70 = vld [vmem:[#allocation2 + $0x160] sm:$0xff]
    %v71 = vld [vmem:[#allocation2 + $0x168] sm:$0xff]
    %v72 = vld [vmem:[#allocation2 + $0x170] sm:$0xff]
    %v73 = vld [vmem:[#allocation2 + $0x178] sm:$0xff]
    %v74 = vld [vmem:[#allocation2 + $0x180] sm:$0xff]
    %v75 = vld [vmem:[#allocation2 + $0x188] sm:$0xff]
    %v76 = vld [vmem:[#allocation2 + $0x190] sm:$0xff]
    %v77 = vld [vmem:[#allocation2 + $0x198] sm:$0xff]
    %v78 = vld [vmem:[#allocation2 + $0x1a0] sm:$0xf]
    %v79 = vld [vmem:[#allocation2 + $0x1a8] sm:$0xf]
    %v80 = vld [vmem:[#allocation2 + $0x1b0] sm:$0xf]
    %v81 = vld [vmem:[#allocation2 + $0x1b8] sm:$0xf]
    %v82 = vld [vmem:[#allocation2 + $0x1c0] sm:$0xf]
    %v83 = vld [vmem:[#allocation2 + $0x1c8] sm:$0xf]
    %v84 = vld [vmem:[#allocation2 + $0x1d0] sm:$0xf]
    %v85 = vld [vmem:[#allocation2 + $0x1d8] sm:$0xf]
    %v86 = vld [vmem:[#allocation2 + $0x1e0] sm:$0xf]
    %v87 = vld [vmem:[#allocation2 + $0x1e8] sm:$0xf]
    %v88 = vld [vmem:[#allocation2 + $0x1f0] sm:$0xf]
    %v89 = vld [vmem:[#allocation2 + $0x1f8] sm:$0xf]
    %v90 = vld [vmem:[#allocation2 + $0x200] sm:$0xf]
    %v91 = vld [vmem:[#allocation2 + $0x208] sm:$0xf]
    %v92 = vld [vmem:[#allocation2 + $0x210] sm:$0xf]
    %v93 = vld [vmem:[#allocation2 + $0x218] sm:$0xf]
    %v94 = vld [vmem:[#allocation2 + $0x220] sm:$0xf]
    %v95 = vld [vmem:[#allocation2 + $0x228] sm:$0xf]
    %v96 = vld [vmem:[#allocation2 + $0x230] sm:$0xf]
    %v97 = vld [vmem:[#allocation2 + $0x238] sm:$0xf]
    %v98 = vld [vmem:[#allocation2 + $0x240] sm:$0xf]
    %v99 = vld [vmem:[#allocation2 + $0x248] sm:$0xf]
    %v100 = vld [vmem:[#allocation2 + $0x250] sm:$0xf]
    %v101 = vld [vmem:[#allocation2 + $0x258] sm:$0xf]
    %v102 = vld [vmem:[#allocation2 + $0x260] sm:$0xf]
    %v103 = vld [vmem:[#allocation2 + $0x268] sm:$0xf]
    %v104 = vld [vmem:[#allocation2 + $0x270] sm:$0xf]
    %v105 = vld [vmem:[#allocation2 + $0x278] sm:$0xf]
    %v106 = vld [vmem:[#allocation2 + $0x280] sm:$0xf]
    %v107 = vld [vmem:[#allocation2 + $0x288] sm:$0xf]
    %v108 = vld [vmem:[#allocation2 + $0x290] sm:$0xf]
    %v109 = vld [vmem:[#allocation2 + $0x298] sm:$0xf]
    %v110 = vld [vmem:[#allocation2 + $0x2a0] sm:$0xf]
    %v111 = vld [vmem:[#allocation2 + $0x2a8] sm:$0xf]
    %v112 = vld [vmem:[#allocation2 + $0x2b0] sm:$0xf]
    %v113 = vld [vmem:[#allocation2 + $0x2b8] sm:$0xf]
    %v114 = vld [vmem:[#allocation2 + $0x2c0] sm:$0xf]
    %v115 = vld [vmem:[#allocation2 + $0x2c8] sm:$0xf]
    %v116 = vld [vmem:[#allocation2 + $0x2d0] sm:$0xf]
    %v117 = vld [vmem:[#allocation2 + $0x2d8] sm:$0xf]
    %v118 = vld [vmem:[#allocation2 + $0x2e0] sm:$0xf]
    %v119 = vld [vmem:[#allocation2 + $0x2e8] sm:$0xf]
    %v120 = vld [vmem:[#allocation2 + $0x2f0] sm:$0xf]
    %v121 = vld [vmem:[#allocation2 + $0x2f8] sm:$0xf]
    %v122 = vld [vmem:[#allocation2 + $0x300] sm:$0xf]
    %v123 = vld [vmem:[#allocation2 + $0x308] sm:$0xf]
    %v124 = vld [vmem:[#allocation2 + $0x310] sm:$0xf]
    %v125 = vld [vmem:[#allocation2 + $0x318] sm:$0xf]
    %v126 = vld [vmem:[#allocation2 + $0x320] sm:$0xff]
    %v127 = vunpack.c.l.bf16 %v126
    %v128 = vunpack.c.h.bf16 %v126
    %v129 = vld [vmem:[%s0] sm:$0xf]
    %v130 = vlaneseq
    %v131 = vshrl.u32 %v130, 7
    %v132 = vsub.s32 0, %v131
    %v133 = vrot.slane %v127, %v132
    %v138 = vunpack.c.l.b16 %v26
    %v139 = vunpack.c.l.b16 %v27
    %v140 = vunpack.c.l.b16 %v28
    %v141 = vunpack.c.l.b16 %v29
    %v142 = vpack.c.b16 %v139, %v138
    %v143 = vpack.c.b16 %v141, %v140
    %vm146 = vcmask 261120
    %v148 = vsel %vm146, %v129, 0
    %150 = vmatprep.subr.bf16.mxu0 0
    %151 = vmatpush1.bf16.msra.mxu0 %v142
    %152 = vmatprep.subr.bf16.mxu0 0
    %153 = vmatpush1.bf16.msra.mxu0 %v143
    %154 = vmatprep.subr.bf16.mxu0 0
    %155 = vmatpush1.bf16.msra.mxu0 0
    %156 = vmatprep.subr.bf16.mxu0 0
    %157 = vmatpush1.bf16.msra.mxu0 0
    %158 = vmatprep.subr.bf16.mxu0 0
    %159 = vmatpush1.bf16.msra.mxu0 0
    %160 = vmatprep.subr.bf16.mxu0 0
    %161 = vmatpush1.bf16.msra.mxu0 0
    %162 = vmatprep.subr.bf16.mxu0 0
    %163 = vmatpush1.bf16.msra.mxu0 0
    %164 = vmatprep.subr.bf16.mxu0 0
    %165 = vmatpush1.bf16.msra.mxu0 0
    %166 = vmatprep.subr.bf16.mxu0 0
    %167 = vmatpush1.bf16.msra.mxu0 0
    %168 = vmatprep.subr.bf16.mxu0 0
    %169 = vmatpush1.bf16.msra.mxu0 0
    %170 = vmatprep.subr.bf16.mxu0 0
    %171 = vmatpush1.bf16.msra.mxu0 0
    %172 = vmatprep.subr.bf16.mxu0 0
    %173 = vmatpush1.bf16.msra.mxu0 0
    %174 = vmatprep.subr.bf16.mxu0 0
    %175 = vmatpush1.bf16.msra.mxu0 0
    %176 = vmatprep.subr.bf16.mxu0 0
    %177 = vmatpush1.bf16.msra.mxu0 0
    %178 = vmatprep.subr.bf16.mxu0 0
    %179 = vmatpush1.bf16.msra.mxu0 0
    %180 = vmatprep.subr.bf16.mxu0 0
    %181 = vmatpush1.bf16.msra.mxu0 0
    %182 = vmatprep.mubr.bf16.mxu0 0
    %183 = vmatmul.mubr.bf16.gmra.mrb[0].mxu0 %v148
    %v184 = vpop.f32.mrb[0].mxu0
    %v185 = vadd.f32 %v133, %v184
    %v186 = vpop.f32.mrb[0].mxu0
    %v187 = vpop.f32.mrb[0].mxu0
    %v188 = vpop.f32.mrb[0].mxu0
    %189 = vdwg.mxu0
    %v190 = vmax.f32 %v185, 0.0
    %v191 = vpack.c.bf16 %v190, %v190
    %v192 = vlaneseq
    %v193 = vshrl.u32 %v192, 7
    %v194 = vsub.s32 1, %v193
    %v195 = vrot.slane %v127, %v194
    %v196 = vlaneseq
    %v197 = vshrl.u32 %v196, 7
    %v198 = vsub.s32 1, %v197
    %v199 = vrot.slane %v128, %v198
    %v216 = vunpack.c.l.b16 %v30
    %v217 = vunpack.c.h.b16 %v30
    %v218 = vunpack.c.l.b16 %v31
    %v219 = vunpack.c.h.b16 %v31
    %v220 = vunpack.c.l.b16 %v32
    %v221 = vunpack.c.h.b16 %v32
    %v222 = vunpack.c.l.b16 %v33
    %v223 = vunpack.c.h.b16 %v33
    %v224 = vunpack.c.l.b16 %v34
    %v225 = vunpack.c.h.b16 %v34
    %v226 = vunpack.c.l.b16 %v35
    %v227 = vunpack.c.h.b16 %v35
    %v228 = vunpack.c.l.b16 %v36
    %v229 = vunpack.c.h.b16 %v36
    %v230 = vunpack.c.l.b16 %v37
    %v231 = vunpack.c.h.b16 %v37
    %v232 = vunpack.c.l.b16 %v38
    %v233 = vunpack.c.h.b16 %v38
    %v234 = vunpack.c.l.b16 %v39
    %v235 = vunpack.c.h.b16 %v39
    %v236 = vunpack.c.l.b16 %v40
    %v237 = vunpack.c.h.b16 %v40
    %v238 = vunpack.c.l.b16 %v41
    %v239 = vunpack.c.h.b16 %v41
    %v240 = vunpack.c.l.b16 %v42
    %v241 = vunpack.c.h.b16 %v42
    %v242 = vunpack.c.l.b16 %v43
    %v243 = vunpack.c.h.b16 %v43
    %v244 = vunpack.c.l.b16 %v44
    %v245 = vunpack.c.h.b16 %v44
    %v246 = vunpack.c.l.b16 %v45
    %v247 = vunpack.c.h.b16 %v45
    %v248 = vpack.c.b16 %v218, %v216
    %v249 = vpack.c.b16 %v219, %v217
    %v250 = vpack.c.b16 %v222, %v220
    %v251 = vpack.c.b16 %v223, %v221
    %v252 = vpack.c.b16 %v226, %v224
    %v253 = vpack.c.b16 %v227, %v225
    %v254 = vpack.c.b16 %v230, %v228
    %v255 = vpack.c.b16 %v231, %v229
    %v256 = vpack.c.b16 %v234, %v232
    %v257 = vpack.c.b16 %v235, %v233
    %v258 = vpack.c.b16 %v238, %v236
    %v259 = vpack.c.b16 %v239, %v237
    %v260 = vpack.c.b16 %v242, %v240
    %v261 = vpack.c.b16 %v243, %v241
    %v262 = vpack.c.b16 %v246, %v244
    %v263 = vpack.c.b16 %v247, %v245
    %280 = vmatprep.subr.bf16.mxu0 %v249
    %281 = vmatpush1.bf16.msra.mxu0 %v248
    %282 = vmatprep.subr.bf16.mxu0 %v251
    %283 = vmatpush1.bf16.msra.mxu0 %v250
    %284 = vmatprep.subr.bf16.mxu0 %v253
    %285 = vmatpush1.bf16.msra.mxu0 %v252
    %286 = vmatprep.subr.bf16.mxu0 %v255
    %287 = vmatpush1.bf16.msra.mxu0 %v254
    %288 = vmatprep.subr.bf16.mxu0 %v257
    %289 = vmatpush1.bf16.msra.mxu0 %v256
    %290 = vmatprep.subr.bf16.mxu0 %v259
    %291 = vmatpush1.bf16.msra.mxu0 %v258
    %292 = vmatprep.subr.bf16.mxu0 %v261
    %293 = vmatpush1.bf16.msra.mxu0 %v260
    %294 = vmatprep.subr.bf16.mxu0 %v263
    %295 = vmatpush1.bf16.msra.mxu0 %v262
    %296 = vmatprep.subr.bf16.mxu0 0
    %297 = vmatpush1.bf16.msra.mxu0 0
    %298 = vmatprep.subr.bf16.mxu0 0
    %299 = vmatpush1.bf16.msra.mxu0 0
    %300 = vmatprep.subr.bf16.mxu0 0
    %301 = vmatpush1.bf16.msra.mxu0 0
    %302 = vmatprep.subr.bf16.mxu0 0
    %303 = vmatpush1.bf16.msra.mxu0 0
    %304 = vmatprep.subr.bf16.mxu0 0
    %305 = vmatpush1.bf16.msra.mxu0 0
    %306 = vmatprep.subr.bf16.mxu0 0
    %307 = vmatpush1.bf16.msra.mxu0 0
    %308 = vmatprep.subr.bf16.mxu0 0
    %309 = vmatpush1.bf16.msra.mxu0 0
    %310 = vmatprep.subr.bf16.mxu0 0
    %311 = vmatpush1.bf16.msra.mxu0 0
    %312 = vmatprep.mubr.bf16.mxu0 0
    %313 = vmatmul.mubr.bf16.gmra.mrb[0].mxu0 %v191
    %v314 = vpop.f32.mrb[0].mxu0
    %v315 = vadd.f32 %v195, %v314
    %v316 = vpop.f32.mrb[0].mxu0
    %v317 = vadd.f32 %v199, %v316
    %v318 = vpop.f32.mrb[0].mxu0
    %v319 = vpop.f32.mrb[0].mxu0
    %320 = vdwg.mxu0
    %v321 = vmax.f32 %v315, 0.0
    %v322 = vmax.f32 %v317, 0.0
    %v323 = vpack.c.bf16 %v321, %v321
    %v324 = vpack.c.bf16 %v322, %v322
    %v325 = vlaneseq
    %v326 = vshrl.u32 %v325, 7
    %v327 = vsub.s32 2, %v326
    %v328 = vrot.slane %v127, %v327
    %v329 = vlaneseq
    %v330 = vshrl.u32 %v329, 7
    %v331 = vsub.s32 2, %v330
    %v332 = vrot.slane %v128, %v331
    %v365 = vunpack.c.l.b16 %v46
    %v366 = vunpack.c.h.b16 %v46
    %v367 = vunpack.c.l.b16 %v47
    %v368 = vunpack.c.h.b16 %v47
    %v369 = vunpack.c.l.b16 %v48
    %v370 = vunpack.c.h.b16 %v48
    %v371 = vunpack.c.l.b16 %v49
    %v372 = vunpack.c.h.b16 %v49
    %v373 = vunpack.c.l.b16 %v50
    %v374 = vunpack.c.h.b16 %v50
    %v375 = vunpack.c.l.b16 %v51
    %v376 = vunpack.c.h.b16 %v51
    %v377 = vunpack.c.l.b16 %v52
    %v378 = vunpack.c.h.b16 %v52
    %v379 = vunpack.c.l.b16 %v53
    %v380 = vunpack.c.h.b16 %v53
    %v381 = vunpack.c.l.b16 %v54
    %v382 = vunpack.c.h.b16 %v54
    %v383 = vunpack.c.l.b16 %v55
    %v384 = vunpack.c.h.b16 %v55
    %v385 = vunpack.c.l.b16 %v56
    %v386 = vunpack.c.h.b16 %v56
    %v387 = vunpack.c.l.b16 %v57
    %v388 = vunpack.c.h.b16 %v57
    %v389 = vunpack.c.l.b16 %v58
    %v390 = vunpack.c.h.b16 %v58
    %v391 = vunpack.c.l.b16 %v59
    %v392 = vunpack.c.h.b16 %v59
    %v393 = vunpack.c.l.b16 %v60
    %v394 = vunpack.c.h.b16 %v60
    %v395 = vunpack.c.l.b16 %v61
    %v396 = vunpack.c.h.b16 %v61
    %v397 = vunpack.c.l.b16 %v62
    %v398 = vunpack.c.h.b16 %v62
    %v399 = vunpack.c.l.b16 %v63
    %v400 = vunpack.c.h.b16 %v63
    %v401 = vunpack.c.l.b16 %v64
    %v402 = vunpack.c.h.b16 %v64
    %v403 = vunpack.c.l.b16 %v65
    %v404 = vunpack.c.h.b16 %v65
    %v405 = vunpack.c.l.b16 %v66
    %v406 = vunpack.c.h.b16 %v66
    %v407 = vunpack.c.l.b16 %v67
    %v408 = vunpack.c.h.b16 %v67
    %v409 = vunpack.c.l.b16 %v68
    %v410 = vunpack.c.h.b16 %v68
    %v411 = vunpack.c.l.b16 %v69
    %v412 = vunpack.c.h.b16 %v69
    %v413 = vunpack.c.l.b16 %v70
    %v414 = vunpack.c.h.b16 %v70
    %v415 = vunpack.c.l.b16 %v71
    %v416 = vunpack.c.h.b16 %v71
    %v417 = vunpack.c.l.b16 %v72
    %v418 = vunpack.c.h.b16 %v72
    %v419 = vunpack.c.l.b16 %v73
    %v420 = vunpack.c.h.b16 %v73
    %v421 = vunpack.c.l.b16 %v74
    %v422 = vunpack.c.h.b16 %v74
    %v423 = vunpack.c.l.b16 %v75
    %v424 = vunpack.c.h.b16 %v75
    %v425 = vunpack.c.l.b16 %v76
    %v426 = vunpack.c.h.b16 %v76
    %v427 = vunpack.c.l.b16 %v77
    %v428 = vunpack.c.h.b16 %v77
    %v429 = vpack.c.b16 %v367, %v365
    %v430 = vpack.c.b16 %v368, %v366
    %v431 = vpack.c.b16 %v371, %v369
    %v432 = vpack.c.b16 %v372, %v370
    %v433 = vpack.c.b16 %v375, %v373
    %v434 = vpack.c.b16 %v376, %v374
    %v435 = vpack.c.b16 %v379, %v377
    %v436 = vpack.c.b16 %v380, %v378
    %v437 = vpack.c.b16 %v383, %v381
    %v438 = vpack.c.b16 %v384, %v382
    %v439 = vpack.c.b16 %v387, %v385
    %v440 = vpack.c.b16 %v388, %v386
    %v441 = vpack.c.b16 %v391, %v389
    %v442 = vpack.c.b16 %v392, %v390
    %v443 = vpack.c.b16 %v395, %v393
    %v444 = vpack.c.b16 %v396, %v394
    %v445 = vpack.c.b16 %v399, %v397
    %v446 = vpack.c.b16 %v400, %v398
    %v447 = vpack.c.b16 %v403, %v401
    %v448 = vpack.c.b16 %v404, %v402
    %v449 = vpack.c.b16 %v407, %v405
    %v450 = vpack.c.b16 %v408, %v406
    %v451 = vpack.c.b16 %v411, %v409
    %v452 = vpack.c.b16 %v412, %v410
    %v453 = vpack.c.b16 %v415, %v413
    %v454 = vpack.c.b16 %v416, %v414
    %v455 = vpack.c.b16 %v419, %v417
    %v456 = vpack.c.b16 %v420, %v418
    %v457 = vpack.c.b16 %v423, %v421
    %v458 = vpack.c.b16 %v424, %v422
    %v459 = vpack.c.b16 %v427, %v425
    %v460 = vpack.c.b16 %v428, %v426
    %493 = vmatprep.subr.bf16.mxu0 %v430
    %494 = vmatpush1.bf16.msra.mxu0 %v429
    %495 = vmatprep.subr.bf16.mxu0 %v432
    %496 = vmatpush1.bf16.msra.mxu0 %v431
    %497 = vmatprep.subr.bf16.mxu0 %v434
    %498 = vmatpush1.bf16.msra.mxu0 %v433
    %499 = vmatprep.subr.bf16.mxu0 %v436
    %500 = vmatpush1.bf16.msra.mxu0 %v435
    %501 = vmatprep.subr.bf16.mxu0 %v438
    %502 = vmatpush1.bf16.msra.mxu0 %v437
    %503 = vmatprep.subr.bf16.mxu0 %v440
    %504 = vmatpush1.bf16.msra.mxu0 %v439
    %505 = vmatprep.subr.bf16.mxu0 %v442
    %506 = vmatpush1.bf16.msra.mxu0 %v441
    %507 = vmatprep.subr.bf16.mxu0 %v444
    %508 = vmatpush1.bf16.msra.mxu0 %v443
    %509 = vmatprep.subr.bf16.mxu0 %v446
    %510 = vmatpush1.bf16.msra.mxu0 %v445
    %511 = vmatprep.subr.bf16.mxu0 %v448
    %512 = vmatpush1.bf16.msra.mxu0 %v447
    %513 = vmatprep.subr.bf16.mxu0 %v450
    %514 = vmatpush1.bf16.msra.mxu0 %v449
    %515 = vmatprep.subr.bf16.mxu0 %v452
    %516 = vmatpush1.bf16.msra.mxu0 %v451
    %517 = vmatprep.subr.bf16.mxu0 %v454
    %518 = vmatpush1.bf16.msra.mxu0 %v453
    %519 = vmatprep.subr.bf16.mxu0 %v456
    %520 = vmatpush1.bf16.msra.mxu0 %v455
    %521 = vmatprep.subr.bf16.mxu0 %v458
    %522 = vmatpush1.bf16.msra.mxu0 %v457
    %523 = vmatprep.subr.bf16.mxu0 %v460
    %524 = vmatpush1.bf16.msra.mxu0 %v459
    %525 = vmatprep.mubr.bf16.mxu0 %v324
    %526 = vmatmul.mubr.bf16.gmra.mrb[0].mxu0 %v323
    %v527 = vpop.f32.mrb[0].mxu0
    %v528 = vadd.f32 %v328, %v527
    %v529 = vpop.f32.mrb[0].mxu0
    %v530 = vadd.f32 %v332, %v529
    %v531 = vpop.f32.mrb[0].mxu0
    %v532 = vpop.f32.mrb[0].mxu0
    %533 = vdwg.mxu0
    %v534 = vmax.f32 %v528, 0.0
    %v535 = vmax.f32 %v530, 0.0
    %v536 = vpack.c.bf16 %v534, %v534
    %v537 = vpack.c.bf16 %v535, %v535
    %v538 = vlaneseq
    %v539 = vshrl.u32 %v538, 7
    %v540 = vsub.s32 3, %v539
    %v541 = vrot.slane %v127, %v540
    %v574 = vunpack.c.l.b16 %v78
    %v575 = vunpack.c.l.b16 %v79
    %v576 = vunpack.c.l.b16 %v80
    %v577 = vunpack.c.l.b16 %v81
    %v578 = vunpack.c.l.b16 %v82
    %v579 = vunpack.c.l.b16 %v83
    %v580 = vunpack.c.l.b16 %v84
    %v581 = vunpack.c.l.b16 %v85
    %v582 = vunpack.c.l.b16 %v86
    %v583 = vunpack.c.l.b16 %v87
    %v584 = vunpack.c.l.b16 %v88
    %v585 = vunpack.c.l.b16 %v89
    %v586 = vunpack.c.l.b16 %v90
    %v587 = vunpack.c.l.b16 %v91
    %v588 = vunpack.c.l.b16 %v92
    %v589 = vunpack.c.l.b16 %v93
    %v590 = vunpack.c.l.b16 %v94
    %v591 = vunpack.c.l.b16 %v95
    %v592 = vunpack.c.l.b16 %v96
    %v593 = vunpack.c.l.b16 %v97
    %v594 = vunpack.c.l.b16 %v98
    %v595 = vunpack.c.l.b16 %v99
    %v596 = vunpack.c.l.b16 %v100
    %v597 = vunpack.c.l.b16 %v101
    %v598 = vunpack.c.l.b16 %v102
    %v599 = vunpack.c.l.b16 %v103
    %v600 = vunpack.c.l.b16 %v104
    %v601 = vunpack.c.l.b16 %v105
    %v602 = vunpack.c.l.b16 %v106
    %v603 = vunpack.c.l.b16 %v107
    %v604 = vunpack.c.l.b16 %v108
    %v605 = vunpack.c.l.b16 %v109
    %v606 = vpack.c.b16 %v575, %v574
    %v607 = vpack.c.b16 %v577, %v576
    %v608 = vpack.c.b16 %v579, %v578
    %v609 = vpack.c.b16 %v581, %v580
    %v610 = vpack.c.b16 %v583, %v582
    %v611 = vpack.c.b16 %v585, %v584
    %v612 = vpack.c.b16 %v587, %v586
    %v613 = vpack.c.b16 %v589, %v588
    %v614 = vpack.c.b16 %v591, %v590
    %v615 = vpack.c.b16 %v593, %v592
    %v616 = vpack.c.b16 %v595, %v594
    %v617 = vpack.c.b16 %v597, %v596
    %v618 = vpack.c.b16 %v599, %v598
    %v619 = vpack.c.b16 %v601, %v600
    %v620 = vpack.c.b16 %v603, %v602
    %v621 = vpack.c.b16 %v605, %v604
    %638 = vmatprep.subr.bf16.mxu0 0
    %639 = vmatpush1.bf16.msra.mxu0 %v606
    %640 = vmatprep.subr.bf16.mxu0 0
    %641 = vmatpush1.bf16.msra.mxu0 %v607
    %642 = vmatprep.subr.bf16.mxu0 0
    %643 = vmatpush1.bf16.msra.mxu0 %v608
    %644 = vmatprep.subr.bf16.mxu0 0
    %645 = vmatpush1.bf16.msra.mxu0 %v609
    %646 = vmatprep.subr.bf16.mxu0 0
    %647 = vmatpush1.bf16.msra.mxu0 %v610
    %648 = vmatprep.subr.bf16.mxu0 0
    %649 = vmatpush1.bf16.msra.mxu0 %v611
    %650 = vmatprep.subr.bf16.mxu0 0
    %651 = vmatpush1.bf16.msra.mxu0 %v612
    %652 = vmatprep.subr.bf16.mxu0 0
    %653 = vmatpush1.bf16.msra.mxu0 %v613
    %654 = vmatprep.subr.bf16.mxu0 0
    %655 = vmatpush1.bf16.msra.mxu0 %v614
    %656 = vmatprep.subr.bf16.mxu0 0
    %657 = vmatpush1.bf16.msra.mxu0 %v615
    %658 = vmatprep.subr.bf16.mxu0 0
    %659 = vmatpush1.bf16.msra.mxu0 %v616
    %660 = vmatprep.subr.bf16.mxu0 0
    %661 = vmatpush1.bf16.msra.mxu0 %v617
    %662 = vmatprep.subr.bf16.mxu0 0
    %663 = vmatpush1.bf16.msra.mxu0 %v618
    %664 = vmatprep.subr.bf16.mxu0 0
    %665 = vmatpush1.bf16.msra.mxu0 %v619
    %666 = vmatprep.subr.bf16.mxu0 0
    %667 = vmatpush1.bf16.msra.mxu0 %v620
    %668 = vmatprep.subr.bf16.mxu0 0
    %669 = vmatpush1.bf16.msra.mxu0 %v621
    %670 = vmatprep.mubr.bf16.mxu0 %v537
    %671 = vmatmul.mubr.bf16.gmra.mrb[0].mxu0 %v536
    %v672 = vpop.f32.mrb[0].mxu0
    %v673 = vadd.f32 %v541, %v672
    %v674 = vpop.f32.mrb[0].mxu0
    %v675 = vpop.f32.mrb[0].mxu0
    %v676 = vpop.f32.mrb[0].mxu0
    %677 = vdwg.mxu0
    %v678 = vmax.f32 %v673, 0.0
    %v679 = vpack.c.bf16 %v678, %v678
    %v680 = vlaneseq
    %v681 = vshrl.u32 %v680, 7
    %v682 = vsub.s32 4, %v681
    %v683 = vrot.slane %v127, %v682
    %v700 = vunpack.c.l.b16 %v110
    %v701 = vunpack.c.l.b16 %v111
    %v702 = vunpack.c.l.b16 %v112
    %v703 = vunpack.c.l.b16 %v113
    %v704 = vunpack.c.l.b16 %v114
    %v705 = vunpack.c.l.b16 %v115
    %v706 = vunpack.c.l.b16 %v116
    %v707 = vunpack.c.l.b16 %v117
    %v708 = vunpack.c.l.b16 %v118
    %v709 = vunpack.c.l.b16 %v119
    %v710 = vunpack.c.l.b16 %v120
    %v711 = vunpack.c.l.b16 %v121
    %v712 = vunpack.c.l.b16 %v122
    %v713 = vunpack.c.l.b16 %v123
    %v714 = vunpack.c.l.b16 %v124
    %v715 = vunpack.c.l.b16 %v125
    %v716 = vpack.c.b16 %v701, %v700
    %v717 = vpack.c.b16 %v703, %v702
    %v718 = vpack.c.b16 %v705, %v704
    %v719 = vpack.c.b16 %v707, %v706
    %v720 = vpack.c.b16 %v709, %v708
    %v721 = vpack.c.b16 %v711, %v710
    %v722 = vpack.c.b16 %v713, %v712
    %v723 = vpack.c.b16 %v715, %v714
    %732 = vmatprep.subr.bf16.mxu0 0
    %733 = vmatpush1.bf16.msra.mxu0 %v716
    %734 = vmatprep.subr.bf16.mxu0 0
    %735 = vmatpush1.bf16.msra.mxu0 %v717
    %736 = vmatprep.subr.bf16.mxu0 0
    %737 = vmatpush1.bf16.msra.mxu0 %v718
    %738 = vmatprep.subr.bf16.mxu0 0
    %739 = vmatpush1.bf16.msra.mxu0 %v719
    %740 = vmatprep.subr.bf16.mxu0 0
    %741 = vmatpush1.bf16.msra.mxu0 %v720
    %742 = vmatprep.subr.bf16.mxu0 0
    %743 = vmatpush1.bf16.msra.mxu0 %v721
    %744 = vmatprep.subr.bf16.mxu0 0
    %745 = vmatpush1.bf16.msra.mxu0 %v722
    %746 = vmatprep.subr.bf16.mxu0 0
    %747 = vmatpush1.bf16.msra.mxu0 %v723
    %748 = vmatprep.subr.bf16.mxu0 0
    %749 = vmatpush1.bf16.msra.mxu0 0
    %750 = vmatprep.subr.bf16.mxu0 0
    %751 = vmatpush1.bf16.msra.mxu0 0
    %752 = vmatprep.subr.bf16.mxu0 0
    %753 = vmatpush1.bf16.msra.mxu0 0
    %754 = vmatprep.subr.bf16.mxu0 0
    %755 = vmatpush1.bf16.msra.mxu0 0
    %756 = vmatprep.subr.bf16.mxu0 0
    %757 = vmatpush1.bf16.msra.mxu0 0
    %758 = vmatprep.subr.bf16.mxu0 0
    %759 = vmatpush1.bf16.msra.mxu0 0
    %760 = vmatprep.subr.bf16.mxu0 0
    %761 = vmatpush1.bf16.msra.mxu0 0
    %762 = vmatprep.subr.bf16.mxu0 0
    %763 = vmatpush1.bf16.msra.mxu0 0
    %764 = vmatprep.mubr.bf16.mxu0 0
    %765 = vmatmul.mubr.bf16.gmra.mrb[0].mxu0 %v679
    %v766 = vpop.f32.mrb[0].mxu0
    %v767 = vadd.f32 %v683, %v766
    %v768 = vpop.f32.mrb[0].mxu0
    %v769 = vpop.f32.mrb[0].mxu0
    %v770 = vpop.f32.mrb[0].mxu0
    %771 = vdwg.mxu0
    %772 = vst [vmem:[%s2] sm:$0xff] %v767
    // Predicated region
    $region14: #{dqn_forward.1} parent=1 // pred_check
      _
    $region15: #{dqn_forward.1} parent=1 // pred_check_branch
      %774 = sbr.rel (0) target = $region17
    $region16: #{dqn_forward.1} parent=1 // pred_region
      _
    $region17: #{dqn_forward.1} parent=1 // pred_fallthru
      _
    // Predicated region
    $region18: #{dqn_forward.1} parent=1 // pred_check
      _
    $region19: #{dqn_forward.1} parent=1 // pred_check_branch
      %776 = sbr.rel (0) target = $region21
    $region20: #{dqn_forward.1} parent=1 // pred_region
      _
    $region21: #{dqn_forward.1} parent=1 // pred_fallthru
      _
    %777 = vsyncpa [#allocation3], 1

</llo_original>
